<compile_context>
chip_gen: v6e
topology: v6e:2x2x1
jax: 0.10.0
libtpu: 0.0.40
codegen_flags: <defaults>
</compile_context>

<pallas_src>
import functools
import math

import jax
import jax.numpy as jnp
import numpy as np
from jax import lax
from jax.experimental import pallas as pl
from jax.experimental.pallas import tpu as pltpu


def _gelu_exact(x):
    # PyTorch nn.GELU() default = exact (erf-based) GELU.
    return 0.5 * x * (1.0 + lax.erf(x * (1.0 / math.sqrt(2.0))))


def _fold_lanes(a_cp, c, p):
    # (..., C*P) packed lanes -> (..., C) by summing the P position groups.
    a = a_cp[..., 0:c]
    for wi in range(1, p):
        a = a + a_cp[..., wi * c:(wi + 1) * c]
    return a


# --------------------------------------------------------------------------
# Fused single-pass kernel (grid over batch tiles): x read from HBM once.
# --------------------------------------------------------------------------
def _fused_kernel(x_ref, w1_ref, w2_ref, o_ref, *, k, c, p, ts):
    # x_ref : (TB, K, S, C*P)  lane-dense packed view (S = padded HW / P)
    # w1_ref: (C, C)           = mlp1.weight.T
    # w2_ref: (C, K*C)         = mlp2.weight.T  (single fused matmul)
    # o_ref : (TB, S, C*P)
    f32 = jnp.float32
    tb = x_ref.shape[0]
    s = x_ref.shape[2]
    cp = x_ref.shape[3]
    n_chunks = s // ts

    # ---- a = sum over split + spatial (f32), chunked over S so only one
    #      (TB, TS, CP) slice is live at a time ------------------------------
    def red_body(ci, acc):
        base = pl.multiple_of(ci * ts, ts)
        for j in range(k):
            acc = acc + jnp.sum(x_ref[:, j, pl.ds(base, ts), :],
                                axis=1, dtype=f32)
        return acc

    a_cp = lax.fori_loop(0, n_chunks, red_body, jnp.zeros((tb, cp), f32))
    a = _fold_lanes(a_cp, c, p)                                   # (TB, C)

    # ---- mlp1 -> exact GELU -> fused mlp2 (one MXU push instead of K) ------
    h1 = _gelu_exact(jnp.dot(a, w1_ref[...], preferred_element_type=f32))
    logits = jnp.dot(h1, w2_ref[...], preferred_element_type=f32)  # (TB, K*C)
    lg = [logits[:, j * c:(j + 1) * c] for j in range(k)]

    # ---- softmax over the K axis (tiny (TB, C) data) ------------------------
    m = lg[0]
    for j in range(1, k):
        m = jnp.maximum(m, lg[j])
    ex = [jnp.exp(v - m) for v in lg]
    den = ex[0]
    for j in range(1, k):
        den = den + ex[j]
    inv = 1.0 / den                                                # (TB, C)

    # Lane-replicated attention weights, hoisted out of the combine loop.
    bar = []
    for j in range(k):
        bj = ex[j] * inv
        if p > 1:
            bj = jnp.concatenate([bj] * p, axis=1)                 # (TB, C*P)
        bar.append(bj[:, None, :])                                 # (TB, 1, C*P)

    # ---- out = sum_j bar_j * x_j, chunked over S with immediate stores -----
    @pl.loop(0, n_chunks)
    def _(ci):
        base = pl.multiple_of(ci * ts, ts)
        acc = bar[0] * x_ref[:, 0, pl.ds(base, ts), :]             # -> f32
        for j in range(1, k):
            acc = acc + bar[j] * x_ref[:, j, pl.ds(base, ts), :]
        o_ref[:, pl.ds(base, ts), :] = acc.astype(o_ref.dtype)


# --------------------------------------------------------------------------
# S-tiled two-pass path (used when the fused per-batch tile does not fit VMEM)
# --------------------------------------------------------------------------
def _reduce_kernel(x_ref, a_ref, *, k):
    # x_ref: (TB, K, TS, CP); a_ref: (TB, 1, CP) f32 accumulator, resident
    # across the (arbitrary) S grid axis.
    @pl.when(pl.program_id(1) == 0)
    def _():
        a_ref[...] = jnp.zeros_like(a_ref)

    part = jnp.sum(x_ref[:, 0], axis=1, dtype=jnp.float32)
    for j in range(1, k):
        part = part + jnp.sum(x_ref[:, j], axis=1, dtype=jnp.float32)
    a_ref[...] += part[:, None, :]


def _combine_kernel(x_ref, bar_ref, o_ref, *, k):
    # x_ref: (TB, K, TS, CP); bar_ref: (TB, K, CP) f32; o_ref: (TB, TS, CP)
    acc = bar_ref[:, 0, :][:, None, :] * x_ref[:, 0]
    for j in range(1, k):
        acc = acc + bar_ref[:, j, :][:, None, :] * x_ref[:, j]
    o_ref[...] = acc.astype(o_ref.dtype)


# --------------------------------------------------------------------------
# Sizing helpers
# --------------------------------------------------------------------------
def _vmem_limit_bytes():
    cap = 64 << 20                      # conservative default (v7x per-TC VMEM)
    try:
        cap = int(pltpu.get_tpu_info().vmem_capacity_bytes)
    except Exception:
        pass
    # Headroom for compiler-internal scratch; cap at 96 MiB (v5e/v6e).
    return int(min(max(cap - (16 << 20), 32 << 20), 96 << 20))


def _choose_chunk(s, cap):
    """Return (ts, s_pad): S-chunk rows (multiple of 8 when chunking) + padded S."""
    cap = max(8, (cap // 8) * 8)
    if s <= cap:
        return s, s
    for ts in range(cap, cap // 2 - 1, -8):       # prefer an exact divisor
        if s % ts == 0:
            return ts, s
    ts = cap                                       # else pad S up (zeros)
    return ts, ((s + ts - 1) // ts) * ts


# --------------------------------------------------------------------------
# pallas_call wrappers
# --------------------------------------------------------------------------
def _fused_call(x_pack, w1_t, w2_t, *, k, c, p, ts, tb, vmem_limit, hw):
    b, _, s_pad, cp = x_pack.shape
    itemsize = jnp.dtype(x_pack.dtype).itemsize
    kernel = functools.partial(_fused_kernel, k=k, c=c, p=p, ts=ts)
    cost = pl.CostEstimate(
        flops=int(2 * b * c * c * (1 + k) + 3 * b * k * hw * c),
        transcendentals=int(b * (k + 1) * c),
        bytes_accessed=int(b * (k + 1) * s_pad * cp * itemsize
                           + (1 + k) * c * c * jnp.dtype(w1_t.dtype).itemsize),
    )
    return pl.pallas_call(
        kernel,
        out_shape=jax.ShapeDtypeStruct((b, s_pad, cp), x_pack.dtype),
        grid_spec=pltpu.PrefetchScalarGridSpec(
            num_scalar_prefetch=0,
            grid=(b // tb,),
            in_specs=[
                pl.BlockSpec((tb, k, s_pad, cp), lambda i: (i, 0, 0, 0)),
                pl.BlockSpec((c, c), lambda i: (0, 0)),
                pl.BlockSpec((c, k * c), lambda i: (0, 0)),
            ],
            out_specs=pl.BlockSpec((tb, s_pad, cp), lambda i: (i, 0, 0)),
        ),
        compiler_params=pltpu.CompilerParams(
            dimension_semantics=("parallel",),
            vmem_limit_bytes=vmem_limit,
        ),
        cost_estimate=cost,
    )(x_pack, w1_t, w2_t)


def _tiled_call(x_pack, w1_t, w2_t, *, k, c, p, ts, vmem_limit, budget):
    b, _, s_pad, cp = x_pack.shape
    itemsize = jnp.dtype(x_pack.dtype).itemsize
    ns = s_pad // ts

    per_b = (2 * (k + 1) * ts * cp * itemsize   # dbl-buffered x + out blocks
             + ts * cp * 4                      # f32 combine temporary
             + 2 * k * cp * 4)                  # dbl-buffered bar block
    feas = [t for t in range(1, b + 1) if b % t == 0 and t * per_b <= budget // 2]
    tb = max(feas) if feas else 1

    # Pass 1: a = sum over split + spatial, accumulated along the S grid axis.
    a_cp = pl.pallas_call(
        functools.partial(_reduce_kernel, k=k),
        out_shape=jax.ShapeDtypeStruct((b, 1, cp), jnp.float32),
        grid_spec=pltpu.PrefetchScalarGridSpec(
            num_scalar_prefetch=0,
            grid=(b // tb, ns),
            in_specs=[pl.BlockSpec((tb, k, ts, cp), lambda i, j: (i, 0, j, 0))],
            out_specs=pl.BlockSpec((tb, 1, cp), lambda i, j: (i, 0, 0)),
        ),
        compiler_params=pltpu.CompilerParams(
            dimension_semantics=("parallel", "arbitrary"),
            vmem_limit_bytes=vmem_limit,
        ),
    )(x_pack)

    # Tiny MLP + softmax on (B, C): negligible next to HBM traffic, leave to XLA.
    a = _fold_lanes(a_cp[:, 0, :], c, p)                        # (B, C)
    h1 = _gelu_exact(jnp.dot(a, w1_t.astype(jnp.float32)))
    logits = jnp.dot(h1, w2_t.astype(jnp.float32)).reshape(b, k, c)
    bar = jax.nn.softmax(logits, axis=1)                        # (B, K, C)
    if p > 1:
        bar = jnp.concatenate([bar] * p, axis=-1)               # (B, K, C*P)

    # Pass 2: out = sum_j bar_j * x_j, tiled over batch and S.
    return pl.pallas_call(
        functools.partial(_combine_kernel, k=k),
        out_shape=jax.ShapeDtypeStruct((b, s_pad, cp), x_pack.dtype),
        grid_spec=pltpu.PrefetchScalarGridSpec(
            num_scalar_prefetch=0,
            grid=(b // tb, ns),
            in_specs=[
                pl.BlockSpec((tb, k, ts, cp), lambda i, j: (i, 0, j, 0)),
                pl.BlockSpec((tb, k, cp), lambda i, j: (i, 0, 0)),
            ],
            out_specs=pl.BlockSpec((tb, ts, cp), lambda i, j: (i, j, 0)),
        ),
        compiler_params=pltpu.CompilerParams(
            dimension_semantics=("parallel", "parallel"),
            vmem_limit_bytes=vmem_limit,
        ),
    )(x_pack, bar)


# --------------------------------------------------------------------------
# Public entry point
# --------------------------------------------------------------------------
def split_attention(x_all, w1, w2, *, k, _force_tiled=False):
    """x_all: (B, K, H, W, C); w1: (C, C) [out,in]; w2: (K*C, C) [out,in]."""
    b, kk, h, w, c = x_all.shape
    assert kk == k
    hw = h * w
    itemsize = jnp.dtype(x_all.dtype).itemsize
    w_item = jnp.dtype(w1.dtype).itemsize

    # Lane packing: fold P spatial positions into the lane axis so the minor
    # dim C*P is a multiple of 128 (unmasked stores, no lane-padded VMEM).
    p = 128 // math.gcd(c, 128)
    if p > 1 and math.ceil(hw / p) * p > 2 * hw:
        p = 1                                  # padding would > double traffic
    s = -(-hw // p)                            # ceil(hw / p)
    cp = c * p

    vmem_limit = _vmem_limit_bytes()
    budget = int(vmem_limit * 0.7)

    # S-chunk: bounds in-kernel f32 temporaries (fused) and block size (tiled).
    ts_cap = min(512, max(8, budget // (3 * max(1, (k + 1) * cp * itemsize * 2))))
    ts, s_pad = _choose_chunk(s, ts_cap)
    hw_pad = s_pad * p

    # Pack (and zero-pad) x: (B, K, HW, C) -> (B, K, S_pad, C*P). Pad rows are
    # zero so they add nothing to the reduction; they are sliced off at the end.
    x_r = x_all.reshape(b, k, hw, c)
    if hw_pad > hw:
        x_r = jnp.pad(x_r, ((0, 0), (0, 0), (0, hw_pad - hw), (0, 0)))
    x_pack = x_r.reshape(b, k, s_pad, cp)

    # Pre-transposed weights: h1 = a @ w1.T ; hat_a = h1 @ w2.T (single matmul).
    w1_t = w1.T                                # (C, C)
    w2_t = w2.T                                # (C, K*C)

    # ---- fused-path VMEM accounting (incl. weights + chunk temporaries) ----
    fixed = 2 * (c * c + c * k * c) * w_item               # dbl-buffered weights
    per_b = (2 * (k + 1) * s_pad * cp * itemsize           # dbl-buffered in+out
             + ts * cp * (4 + 2 * itemsize)                # chunked combine temps
             + (k + 4) * cp * 4)                           # small (CP,) vectors
    feasible = [t for t in range(1, b + 1)
                if b % t == 0 and fixed + t * per_b <= budget]

    if feasible and not _force_tiled:
        # Prefer >=4 grid steps (pipelining / both v7x TCs), then the largest TB.
        tb = max(feasible, key=lambda t: (min(b // t, 4), t))
        out_pack = _fused_call(x_pack, w1_t, w2_t, k=k, c=c, p=p, ts=ts, tb=tb,
                               vmem_limit=vmem_limit, hw=hw)
    else:
        # Per-batch tile does not fit VMEM: S-tiled two-pass path (x read twice).
        out_pack = _tiled_call(x_pack, w1_t, w2_t, k=k, c=c, p=p, ts=ts,
                               vmem_limit=vmem_limit, budget=budget)

    out = out_pack.reshape(b, s_pad * p, c)[:, :hw, :]
    return out.reshape(b, h, w, c)


# --------------------------------------------------------------------------
# Pure-JAX reference mirroring the PyTorch forward
# --------------------------------------------------------------------------
def split_attention_ref(x_all, w1, w2, *, k):
    b, kk, h, w, c = x_all.shape
    x = x_all.reshape(b, k, -1, c)
    a = jnp.sum(jnp.sum(x, axis=1), axis=1)              # (B, C)
    h1 = _gelu_exact(a @ w1.T)                           # (B, C)
    hat_a = (h1 @ w2.T).reshape(b, k, c)                 # (B, K, C)
    bar_a = jax.nn.softmax(hat_a, axis=1)                # softmax over K
    out = jnp.sum(bar_a[:, :, None, :] * x, axis=1)      # (B, HW, C)
    return out.reshape(b, h, w, c)


if __name__ == "__main__":
    key = jax.random.PRNGKey(0)
    kx, k1, k2, kx2 = jax.random.split(key, 4)

    # Case 1: small shapes consistent with the module (channel=C, k=3 splits).
    B, K, H, W, C = 2, 3, 4, 4, 32
    x_all = jax.random.normal(kx, (B, K, H, W, C), dtype=jnp.float32)
    w1 = jax.random.normal(k1, (C, C), dtype=jnp.float32) / math.sqrt(C)
    w2 = jax.random.normal(k2, (K * C, C), dtype=jnp.float32) / math.sqrt(C)

    out = jax.block_until_ready(split_attention(x_all, w1, w2, k=K))
    ref = jax.block_until_ready(split_attention_ref(x_all, w1, w2, k=K))
    assert out.shape == (B, H, W, C)
    np.testing.assert_allclose(np.asarray(out), np.asarray(ref),
                               rtol=1e-4, atol=1e-4)

    # Case 1b: same inputs through the S-tiled (large-HW) fallback path.
    out_t = jax.block_until_ready(
        split_attention(x_all, w1, w2, k=K, _force_tiled=True))
    np.testing.assert_allclose(np.asarray(out_t), np.asarray(ref),
                               rtol=1e-4, atol=1e-4)

    # Case 2: hw not divisible by the lane-packing factor (exercise zero-pad).
    B2, K2, H2, W2 = 3, 2, 3, 5
    x2 = jax.random.normal(kx2, (B2, K2, H2, W2, C), dtype=jnp.float32)
    w2b = jax.random.normal(k2, (K2 * C, C), dtype=jnp.float32) / math.sqrt(C)
    out2 = jax.block_until_ready(split_attention(x2, w1, w2b, k=K2))
    ref2 = jax.block_until_ready(split_attention_ref(x2, w1, w2b, k=K2))
    np.testing.assert_allclose(np.asarray(out2), np.asarray(ref2),
                               rtol=1e-4, atol=1e-4)

    print("KERNEL_OK")
</pallas_src>

<mosaic_0001>
module attributes {stable_mosaic.version = 11 : i64} {
  func.func @_fused_kernel(%arg0: i32, %arg1: memref<1x3x4x128xf32, #tpu.memory_space<vmem>>, %arg2: memref<32x32xf32, #tpu.memory_space<vmem>>, %arg3: memref<32x96xf32, #tpu.memory_space<vmem>>, %arg4: memref<1x4x128xf32, #tpu.memory_space<vmem>>) attributes {dimension_semantics = [#tpu.dimension_semantics<parallel>], iteration_bounds = array<i64: 2>, scalar_prefetch = 0 : i64, scratch_operands = 0 : i64, tpu.core_type = #tpu.core_type<tc>, window_params = [{transform_indices = @transform_0, window_bounds = array<i64: 1, 3, 4, 128>}, {pipeline_mode = #tpu.pipeline_mode<synchronous>, transform_indices = @transform_1, window_bounds = array<i64: 32, 32>}, {pipeline_mode = #tpu.pipeline_mode<synchronous>, transform_indices = @transform_2, window_bounds = array<i64: 32, 96>}, {transform_indices = @transform_3, window_bounds = array<i64: 1, 4, 128>}]} {
    %cst = arith.constant 0.000000e+00 : f32
    %0 = vector.broadcast %cst : f32 to vector<1x128xf32>
    %c0_i32 = arith.constant 0 : i32
    %c4_i32 = arith.constant 4 : i32
    %1 = arith.muli %c0_i32, %c4_i32 : i32
    %2 = tpu.assume_multiple %1, 4 : i32
    %c0 = arith.constant 0 : index
    %c0_0 = arith.constant 0 : index
    %3 = arith.index_cast %2 : i32 to index
    %c0_1 = arith.constant 0 : index
    %4 = vector.load %arg1[%c0, %c0_0, %3, %c0_1] : memref<1x3x4x128xf32, #tpu.memory_space<vmem>>, vector<1x1x4x128xf32>
    %5 = vector.shape_cast %4 : vector<1x1x4x128xf32> to vector<1x4x128xf32>
    %cst_2 = arith.constant dense<0.000000e+00> : vector<1x128xf32>
    %6 = vector.multi_reduction <add>, %5, %cst_2 [1] : vector<1x4x128xf32> to vector<1x128xf32>
    %7 = arith.addf %0, %6 : vector<1x128xf32>
    %c0_3 = arith.constant 0 : index
    %c1 = arith.constant 1 : index
    %8 = arith.index_cast %2 : i32 to index
    %c0_4 = arith.constant 0 : index
    %9 = vector.load %arg1[%c0_3, %c1, %8, %c0_4] : memref<1x3x4x128xf32, #tpu.memory_space<vmem>>, vector<1x1x4x128xf32>
    %10 = vector.shape_cast %9 : vector<1x1x4x128xf32> to vector<1x4x128xf32>
    %cst_5 = arith.constant dense<0.000000e+00> : vector<1x128xf32>
    %11 = vector.multi_reduction <add>, %10, %cst_5 [1] : vector<1x4x128xf32> to vector<1x128xf32>
    %12 = arith.addf %7, %11 : vector<1x128xf32>
    %c0_6 = arith.constant 0 : index
    %c2 = arith.constant 2 : index
    %13 = arith.index_cast %2 : i32 to index
    %c0_7 = arith.constant 0 : index
    %14 = vector.load %arg1[%c0_6, %c2, %13, %c0_7] : memref<1x3x4x128xf32, #tpu.memory_space<vmem>>, vector<1x1x4x128xf32>
    %15 = vector.shape_cast %14 : vector<1x1x4x128xf32> to vector<1x4x128xf32>
    %cst_8 = arith.constant dense<0.000000e+00> : vector<1x128xf32>
    %16 = vector.multi_reduction <add>, %15, %cst_8 [1] : vector<1x4x128xf32> to vector<1x128xf32>
    %17 = arith.addf %12, %16 : vector<1x128xf32>
    %c1_i32 = arith.constant 1 : i32
    %18 = vector.extract_strided_slice %17 {offsets = [0, 0], sizes = [1, 32], strides = [1, 1]} : vector<1x128xf32> to vector<1x32xf32>
    %19 = vector.extract_strided_slice %17 {offsets = [0, 32], sizes = [1, 32], strides = [1, 1]} : vector<1x128xf32> to vector<1x32xf32>
    %20 = arith.addf %18, %19 : vector<1x32xf32>
    %21 = vector.extract_strided_slice %17 {offsets = [0, 64], sizes = [1, 32], strides = [1, 1]} : vector<1x128xf32> to vector<1x32xf32>
    %22 = arith.addf %20, %21 : vector<1x32xf32>
    %23 = vector.extract_strided_slice %17 {offsets = [0, 96], sizes = [1, 32], strides = [1, 1]} : vector<1x128xf32> to vector<1x32xf32>
    %24 = arith.addf %22, %23 : vector<1x32xf32>
    %c0_9 = arith.constant 0 : index
    %c0_10 = arith.constant 0 : index
    %25 = vector.load %arg2[%c0_9, %c0_10] : memref<32x32xf32, #tpu.memory_space<vmem>>, vector<32x32xf32>
    %cst_11 = arith.constant dense<0.000000e+00> : vector<1x32xf32>
    %26 = tpu.matmul %24, %25, %cst_11 {dimension_numbers = #tpu.dot_dimension_numbers<[1], [0], [0], [1], [0, 0, 1, 1], [], []>} : vector<1x32xf32>, vector<32x32xf32>, vector<1x32xf32> -> vector<1x32xf32>
    %cst_12 = arith.constant 5.000000e-01 : f32
    %27 = vector.broadcast %cst_12 : f32 to vector<1x32xf32>
    %28 = arith.mulf %27, %26 : vector<1x32xf32>
    %cst_13 = arith.constant 0.707106769 : f32
    %29 = vector.broadcast %cst_13 : f32 to vector<1x32xf32>
    %30 = arith.mulf %26, %29 : vector<1x32xf32>
    %31 = math.erf %30 : vector<1x32xf32>
    %cst_14 = arith.constant 1.000000e+00 : f32
    %32 = vector.broadcast %cst_14 : f32 to vector<1x32xf32>
    %33 = arith.addf %32, %31 : vector<1x32xf32>
    %34 = arith.mulf %28, %33 : vector<1x32xf32>
    %c0_15 = arith.constant 0 : index
    %c0_16 = arith.constant 0 : index
    %35 = vector.load %arg3[%c0_15, %c0_16] : memref<32x96xf32, #tpu.memory_space<vmem>>, vector<32x96xf32>
    %cst_17 = arith.constant dense<0.000000e+00> : vector<1x96xf32>
    %36 = tpu.matmul %34, %35, %cst_17 {dimension_numbers = #tpu.dot_dimension_numbers<[1], [0], [0], [1], [0, 0, 1, 1], [], []>} : vector<1x32xf32>, vector<32x96xf32>, vector<1x96xf32> -> vector<1x96xf32>
    %37 = vector.extract_strided_slice %36 {offsets = [0, 0], sizes = [1, 32], strides = [1, 1]} : vector<1x96xf32> to vector<1x32xf32>
    %38 = vector.extract_strided_slice %36 {offsets = [0, 32], sizes = [1, 32], strides = [1, 1]} : vector<1x96xf32> to vector<1x32xf32>
    %39 = vector.extract_strided_slice %36 {offsets = [0, 64], sizes = [1, 32], strides = [1, 1]} : vector<1x96xf32> to vector<1x32xf32>
    %40 = arith.maximumf %37, %38 : vector<1x32xf32>
    %41 = arith.maximumf %40, %39 : vector<1x32xf32>
    %42 = arith.subf %37, %41 : vector<1x32xf32>
    %43 = math.exp %42 : vector<1x32xf32>
    %44 = arith.subf %38, %41 : vector<1x32xf32>
    %45 = math.exp %44 : vector<1x32xf32>
    %46 = arith.subf %39, %41 : vector<1x32xf32>
    %47 = math.exp %46 : vector<1x32xf32>
    %48 = arith.addf %43, %45 : vector<1x32xf32>
    %49 = arith.addf %48, %47 : vector<1x32xf32>
    %cst_18 = arith.constant 1.000000e+00 : f32
    %50 = vector.broadcast %cst_18 : f32 to vector<1x32xf32>
    %51 = arith.divf %50, %49 : vector<1x32xf32>
    %52 = arith.mulf %43, %51 : vector<1x32xf32>
    %53 = tpu.concatenate %52, %52, %52, %52 in 1 : vector<1x32xf32>, vector<1x32xf32>, vector<1x32xf32>, vector<1x32xf32> -> vector<1x128xf32>
    %54 = vector.shape_cast %53 : vector<1x128xf32> to vector<1x1x128xf32>
    %55 = arith.mulf %45, %51 : vector<1x32xf32>
    %56 = tpu.concatenate %55, %55, %55, %55 in 1 : vector<1x32xf32>, vector<1x32xf32>, vector<1x32xf32>, vector<1x32xf32> -> vector<1x128xf32>
    %57 = vector.shape_cast %56 : vector<1x128xf32> to vector<1x1x128xf32>
    %58 = arith.mulf %47, %51 : vector<1x32xf32>
    %59 = tpu.concatenate %58, %58, %58, %58 in 1 : vector<1x32xf32>, vector<1x32xf32>, vector<1x32xf32>, vector<1x32xf32> -> vector<1x128xf32>
    %60 = vector.shape_cast %59 : vector<1x128xf32> to vector<1x1x128xf32>
    %c0_i32_19 = arith.constant 0 : i32
    %c1_i32_20 = arith.constant 1 : i32
    %61 = arith.muli %c0_i32_19, %c1_i32_20 : i32
    %c0_i32_21 = arith.constant 0 : i32
    %62 = arith.addi %c0_i32_21, %61 : i32
    %c4_i32_22 = arith.constant 4 : i32
    %63 = arith.muli %62, %c4_i32_22 : i32
    %64 = tpu.assume_multiple %63, 4 : i32
    %c0_23 = arith.constant 0 : index
    %c0_24 = arith.constant 0 : index
    %65 = arith.index_cast %64 : i32 to index
    %c0_25 = arith.constant 0 : index
    %66 = vector.load %arg1[%c0_23, %c0_24, %65, %c0_25] : memref<1x3x4x128xf32, #tpu.memory_space<vmem>>, vector<1x1x4x128xf32>
    %67 = vector.shape_cast %66 : vector<1x1x4x128xf32> to vector<1x4x128xf32>
    %68 = vector.broadcast %54 : vector<1x1x128xf32> to vector<1x4x128xf32>
    %69 = arith.mulf %68, %67 : vector<1x4x128xf32>
    %c0_26 = arith.constant 0 : index
    %c1_27 = arith.constant 1 : index
    %70 = arith.index_cast %64 : i32 to index
    %c0_28 = arith.constant 0 : index
    %71 = vector.load %arg1[%c0_26, %c1_27, %70, %c0_28] : memref<1x3x4x128xf32, #tpu.memory_space<vmem>>, vector<1x1x4x128xf32>
    %72 = vector.shape_cast %71 : vector<1x1x4x128xf32> to vector<1x4x128xf32>
    %73 = vector.broadcast %57 : vector<1x1x128xf32> to vector<1x4x128xf32>
    %74 = arith.mulf %73, %72 : vector<1x4x128xf32>
    %75 = arith.addf %69, %74 : vector<1x4x128xf32>
    %c0_29 = arith.constant 0 : index
    %c2_30 = arith.constant 2 : index
    %76 = arith.index_cast %64 : i32 to index
    %c0_31 = arith.constant 0 : index
    %77 = vector.load %arg1[%c0_29, %c2_30, %76, %c0_31] : memref<1x3x4x128xf32, #tpu.memory_space<vmem>>, vector<1x1x4x128xf32>
    %78 = vector.shape_cast %77 : vector<1x1x4x128xf32> to vector<1x4x128xf32>
    %79 = vector.broadcast %60 : vector<1x1x128xf32> to vector<1x4x128xf32>
    %80 = arith.mulf %79, %78 : vector<1x4x128xf32>
    %81 = arith.addf %75, %80 : vector<1x4x128xf32>
    %c0_32 = arith.constant 0 : index
    %82 = arith.index_cast %64 : i32 to index
    %c0_33 = arith.constant 0 : index
    %83 = vector.load %arg4[%c0_32, %82, %c0_33] : memref<1x4x128xf32, #tpu.memory_space<vmem>>, vector<1x4x128xf32>
    tpu.vector_store %arg4[%c0_32, %82, %c0_33], %81 {strides = array<i32>} : memref<1x4x128xf32, #tpu.memory_space<vmem>>, vector<1x4x128xf32>,
    %c1_i32_34 = arith.constant 1 : i32
    return
  }
  func.func @transform_0(%arg0: i32) -> (i32, i32, i32, i32) {
    %c0_i32 = arith.constant 0 : i32
    %c0_i32_0 = arith.constant 0 : i32
    %c0_i32_1 = arith.constant 0 : i32
    %c0_i32_2 = arith.constant 0 : i32
    return %arg0, %c0_i32, %c0_i32_0, %c0_i32_1 : i32, i32, i32, i32
  }
  func.func @transform_1(%arg0: i32) -> (i32, i32) {
    %c0_i32 = arith.constant 0 : i32
    %c0_i32_0 = arith.constant 0 : i32
    %c0_i32_1 = arith.constant 0 : i32
    return %c0_i32, %c0_i32_0 : i32, i32
  }
  func.func @transform_2(%arg0: i32) -> (i32, i32) {
    %c0_i32 = arith.constant 0 : i32
    %c0_i32_0 = arith.constant 0 : i32
    %c0_i32_1 = arith.constant 0 : i32
    return %c0_i32, %c0_i32_0 : i32, i32
  }
  func.func @transform_3(%arg0: i32) -> (i32, i32, i32) {
    %c0_i32 = arith.constant 0 : i32
    %c0_i32_0 = arith.constant 0 : i32
    %c0_i32_1 = arith.constant 0 : i32
    return %arg0, %c0_i32, %c0_i32_0 : i32, i32, i32
  }
}

</mosaic_0001>

<llo_original>
// kernel: tpu_custom_call.1
$region0: #{tpu_custom_call.1}
  #allocation0 [shape = 'u32[]', space=smem, size = 0x4, offset = 0x4, fixed_abs, tag = 'smem constant byte address 0x4 - core index']
  #allocation1 [shape = 'u32[144,128]{1,0:T(1,128)}', space=vmem, size = 0x12000, scoped, tag = 'internal scratch']
  %s0 = inlined_call_operand.hbm [shape: f32[2,3,4,128], index: 0, kind: input, shape index: {}]
  %s1 = inlined_call_operand.hbm [shape: f32[32,32], index: 1, kind: input, shape index: {}]
  %s2 = inlined_call_operand.hbm [shape: f32[32,96], index: 2, kind: input, shape index: {}]
  %s3 = inlined_call_operand.hbm [shape: f32[2,4,128], index: 3, kind: output, shape index: {}]
  %s4 = sld [smem:[#allocation0]]
  $region57: #{tpu_custom_call.1} parent=0
    _
  %s6 = ssub.s32 1, %s4
  %s7 = scalar_select 0, %s6, %s4
  $region1: #{tpu_custom_call.1} parent=0
    #allocation2 [shape = 'u8[12288]{0}', space=vmem, size = 0x3000, scoped, tag = 'input window, operand 0']
    #allocation3 [shape = 's32[2]{0}', space=sflag, size = 0x8, scoped, tag = 'scoped memory for tpu_custom_call.1']
    #allocation4 [shape = 's32[2]{0}', space=sflag, size = 0x8, scoped, tag = 'scoped memory for tpu_custom_call.1']
    #allocation5 [shape = 'u8[16384]{0}', space=vmem, size = 0x4000, scoped, tag = 'input window, operand 1, single buffered']
    #allocation6 [shape = 's32[1]{0}', space=sflag, size = 0x4, scoped, tag = 'scoped memory for tpu_custom_call.1']
    #allocation7 [shape = 'u8[16384]{0}', space=vmem, size = 0x4000, scoped, tag = 'input window, operand 2, single buffered']
    #allocation8 [shape = 'u8[4096]{0}', space=vmem, size = 0x1000, scoped, tag = 'output window, operand 0']
    %8 = vsyncpa [#allocation3], 0
    %s9 = scalar_lea.sflag [#allocation3], 1
    %10 = vsyncpa %s9, 0
    %11 = vsyncpa [#allocation6], 0
    %12 = vsyncpa [#allocation4], 0
    %s13 = scalar_lea.sflag [#allocation4], 1
    %14 = vsyncpa %s13, 0
    loop: start=0, step=1, limit=4
    $region2: #{tpu_custom_call.1} parent=1 // loop_pre_header
      _
    $region3: #{tpu_custom_call.1} parent=1 // loop_header
      %s16 = sphi 0, %s20
      %p17 = scmp.ge.s32.totalorder %s16, 4
      %s26 = sphi 0, %s28
      %s29 = sphi 0, %s26
      %s30 = sphi 0, %s29
      %s46 = sphi 0, %s30
      %s50 = sphi 0, %s50
      %s52 = sphi 0, %s50
      %s53 = sphi 0, %s52
      %s67 = sphi 0, %s53
      %s71 = sphi 0, %s71
      %s73 = sphi 0, %s71
      %s74 = sphi 0, %s73
      %s88 = sphi 0, %s74
      %s94 = sphi 0, %s96
      %s97 = sphi 0, %s94
      %s98 = sphi 0, %s97
      %s114 = sphi 0, %s98
    $region4: #{tpu_custom_call.1} parent=1 // loop_header_branch
      %19 = sbr.rel (%p17) target = $region8
    $region5: #{tpu_custom_call.1} parent=1 // loop_body
      %s21 = ssub.s32 %s16, 1
      %s22 = ssub.s32 %s16, 2
      %s23 = sadd.s32 %s16, 1
      %s24 = ssub.s32 %s16, %s23
      %p25 = scmp.eq.s32.totalorder %s24, 0
      %s27 = sadd.s32 %s26, 1
      %s28 = scalar_select %p25, %s26, %s27
      %p31 = pneg %p25
      %p32 = scmp.eq.s32.totalorder %s16, 1
      %p33 = por %p31, %p32
      %p34 = scmp.ne.s32.totalorder %s26, %s29
      %p35 = scmp.eq.s32.totalorder %s16, 0
      %p36 = por %p34, %p35
      %p37 = scmp.ne.s32.totalorder %s26, %s29
      %p38 = scmp.eq.s32.totalorder %s21, 1
      %p39 = por %p37, %p38
      %p40 = scmp.ne.s32.totalorder %s29, %s30
      %p41 = scmp.eq.s32.totalorder %s21, 0
      %p42 = por %p40, %p41
      %p43 = scmp.ne.s32.totalorder %s29, %s30
      %p44 = scmp.eq.s32.totalorder %s22, 1
      %p45 = por %p43, %p44
      %p47 = scmp.ne.s32.totalorder %s30, %s46
      %p48 = scmp.eq.s32.totalorder %s22, 0
      %p49 = por %p47, %p48
      %s51 = sadd.s32 %s50, 1
      %p54 = scmp.eq.s32.totalorder %s16, 1
      %p55 = scmp.ne.s32.totalorder %s50, %s52
      %p56 = scmp.eq.s32.totalorder %s16, 0
      %p57 = por %p55, %p56
      %p58 = scmp.ne.s32.totalorder %s50, %s52
      %p59 = scmp.eq.s32.totalorder %s21, 1
      %p60 = por %p58, %p59
      %p61 = scmp.ne.s32.totalorder %s52, %s53
      %p62 = scmp.eq.s32.totalorder %s21, 0
      %p63 = por %p61, %p62
      %p64 = scmp.ne.s32.totalorder %s52, %s53
      %p65 = scmp.eq.s32.totalorder %s22, 1
      %p66 = por %p64, %p65
      %p68 = scmp.ne.s32.totalorder %s53, %s67
      %p69 = scmp.eq.s32.totalorder %s22, 0
      %p70 = por %p68, %p69
      %s72 = sadd.s32 %s71, 1
      %p75 = scmp.eq.s32.totalorder %s16, 1
      %p76 = scmp.ne.s32.totalorder %s71, %s73
      %p77 = scmp.eq.s32.totalorder %s16, 0
      %p78 = por %p76, %p77
      %p79 = scmp.ne.s32.totalorder %s71, %s73
      %p80 = scmp.eq.s32.totalorder %s21, 1
      %p81 = por %p79, %p80
      %p82 = scmp.ne.s32.totalorder %s73, %s74
      %p83 = scmp.eq.s32.totalorder %s21, 0
      %p84 = por %p82, %p83
      %p85 = scmp.ne.s32.totalorder %s73, %s74
      %p86 = scmp.eq.s32.totalorder %s22, 1
      %p87 = por %p85, %p86
      %p89 = scmp.ne.s32.totalorder %s74, %s88
      %p90 = scmp.eq.s32.totalorder %s22, 0
      %p91 = por %p89, %p90
      %s92 = ssub.s32 %s16, %s23
      %p93 = scmp.eq.s32.totalorder %s92, 0
      %s95 = sadd.s32 %s94, 1
      %s96 = scalar_select %p93, %s94, %s95
      %p99 = pneg %p93
      %p100 = scmp.eq.s32.totalorder %s16, 1
      %p101 = por %p99, %p100
      %p102 = scmp.ne.s32.totalorder %s94, %s97
      %p103 = scmp.eq.s32.totalorder %s16, 0
      %p104 = por %p102, %p103
      %p105 = scmp.ne.s32.totalorder %s94, %s97
      %p106 = scmp.eq.s32.totalorder %s21, 1
      %p107 = por %p105, %p106
      %p108 = scmp.ne.s32.totalorder %s97, %s98
      %p109 = scmp.eq.s32.totalorder %s21, 0
      %p110 = por %p108, %p109
      %p111 = scmp.ne.s32.totalorder %s97, %s98
      %p112 = scmp.eq.s32.totalorder %s22, 1
      %p113 = por %p111, %p112
      %p115 = scmp.ne.s32.totalorder %s98, %s114
      %p116 = scmp.eq.s32.totalorder %s22, 0
      %p117 = por %p115, %p116
      %p118 = scmp.le.s32.totalorder 1, %s16
      %p119 = scmp.lt.s32.totalorder %s16, 3
      %p120 = pnand %p118, %p119
      %p121 = pneg %p120
      // Predicated region
      $region9: #{tpu_custom_call.1} parent=5 // pred_check
        _
      $region10: #{tpu_custom_call.1} parent=5 // pred_check_branch
        %123 = sbr.rel (%p120) target = $region12
      $region11: #{tpu_custom_call.1} parent=5 // pred_region
        %s124 = ssub.s32 %s16, 1
        // Predicated region
        $region13: #{tpu_custom_call.1} parent=11 // pred_check
          %p125 = pneg %p63
        $region14: #{tpu_custom_call.1} parent=11 // pred_check_branch
          %127 = sbr.rel (%p125) target = $region16
        $region15: #{tpu_custom_call.1} parent=11 // pred_region
          %s129 = ssub.s32 512, 512
          %130 = vsyncadd [#allocation6], %s129
          %s131 = sshll.u32 [#allocation5], 4
          %s132 = int_to_ptr.vmem [resolvable:$true] %s131
          %137 = dma.hbm_to_vmem [thread:$0]  %s1, 512, %s132, [#allocation6], 128, 128, 8
        $region16: #{tpu_custom_call.1} parent=11 // pred_fallthru
          _
        // Predicated region
        $region17: #{tpu_custom_call.1} parent=11 // pred_check
          %p138 = pneg %p84
        $region18: #{tpu_custom_call.1} parent=11 // pred_check_branch
          %140 = sbr.rel (%p138) target = $region20
        $region19: #{tpu_custom_call.1} parent=11 // pred_region
          %s142 = ssub.s32 512, 512
          %143 = vsyncadd [#allocation6], %s142
          %s144 = sshll.u32 [#allocation7], 4
          %s145 = int_to_ptr.vmem [resolvable:$true] %s144
          %150 = dma.hbm_to_vmem [thread:$0]  %s2, 512, %s145, [#allocation6], 128, 128, 8
        $region20: #{tpu_custom_call.1} parent=11 // pred_fallthru
          _
      $region12: #{tpu_custom_call.1} parent=5 // pred_fallthru
        _
      %p151 = scmp.lt.s32.totalorder %s16, 2
      // Predicated region
      $region21: #{tpu_custom_call.1} parent=5 // pred_check
        %p152 = pneg %p151
      $region22: #{tpu_custom_call.1} parent=5 // pred_check_branch
        %154 = sbr.rel (%p152) target = $region24
      $region23: #{tpu_custom_call.1} parent=5 // pred_region
        // Predicated region
        $region25: #{tpu_custom_call.1} parent=23 // pred_check
          %p155 = pneg %p36
        $region26: #{tpu_custom_call.1} parent=23 // pred_check_branch
          %157 = sbr.rel (%p155) target = $region28
        $region27: #{tpu_custom_call.1} parent=23 // pred_region
          %s158 = sand.u32 %s26, 1
          %s159 = scalar_lea.sflag [#allocation3], %s158
          %s160 = sand.u32 %s26, 1
          %s161 = smul.addr %s160, 12
          %s162 = scalar_lea.vmem [#allocation2], %s161
          %s164 = ssub.s32 192, 192
          %165 = vsyncadd %s159, %s164
          %s166 = smul.addr %s16, 3
          %s167 = smul.addr %s166, 64
          %s168 = scalar_lea.hbm %s0, %s167
          %s169 = sshll.u32 %s162, 4
          %s170 = int_to_ptr.vmem [resolvable:$true] %s169
          %175 = dma.hbm_to_vmem [thread:$0]  %s168, 192, %s170, %s159, 64, 64, 4
        $region28: #{tpu_custom_call.1} parent=23 // pred_fallthru
          _
      $region24: #{tpu_custom_call.1} parent=5 // pred_fallthru
        _
      %p176 = scmp.le.s32.totalorder 1, %s16
      %p177 = scmp.lt.s32.totalorder %s16, 3
      %p178 = pnand %p176, %p177
      %p179 = pneg %p178
      // Predicated region
      $region29: #{tpu_custom_call.1} parent=5 // pred_check
        _
      $region30: #{tpu_custom_call.1} parent=5 // pred_check_branch
        %181 = sbr.rel (%p178) target = $region32
      $region31: #{tpu_custom_call.1} parent=5 // pred_region
        %s182 = ssub.s32 %s16, 1
        %s183 = sand.u32 %s29, 1
        %s184 = scalar_lea.sflag [#allocation3], %s183
        %s185 = sand.u32 %s29, 1
        %s186 = smul.addr %s185, 12
        %s187 = scalar_lea.vmem [#allocation2], %s186
        // Predicated region
        $region33: #{tpu_custom_call.1} parent=31 // pred_check
          %p188 = pneg %p42
        $region34: #{tpu_custom_call.1} parent=31 // pred_check_branch
          %190 = sbr.rel (%p188) target = $region36
        $region35: #{tpu_custom_call.1} parent=31 // pred_region
          %191 = dma.done %s184, 192
        $region36: #{tpu_custom_call.1} parent=31 // pred_fallthru
          _
        // Predicated region
        $region37: #{tpu_custom_call.1} parent=31 // pred_check
          %p192 = pneg %p63
        $region38: #{tpu_custom_call.1} parent=31 // pred_check_branch
          %194 = sbr.rel (%p192) target = $region40
        $region39: #{tpu_custom_call.1} parent=31 // pred_region
          %195 = dma.done [#allocation6], 512
        $region40: #{tpu_custom_call.1} parent=31 // pred_fallthru
          _
        // Predicated region
        $region41: #{tpu_custom_call.1} parent=31 // pred_check
          %p196 = pneg %p84
        $region42: #{tpu_custom_call.1} parent=31 // pred_check_branch
          %198 = sbr.rel (%p196) target = $region44
        $region43: #{tpu_custom_call.1} parent=31 // pred_region
          %199 = dma.done [#allocation6], 512
        $region44: #{tpu_custom_call.1} parent=31 // pred_fallthru
          _
        %s200 = sand.u32 %s29, 1
        %s201 = scalar_lea.sflag [#allocation3], %s200
        %s202 = sand.u32 %s29, 1
        %s203 = smul.addr %s202, 12
        %s204 = scalar_lea.vmem [#allocation2], %s203
        %p205 = pneg %p42
        %p206 = pneg %p39
        %p207 = pneg %p63
        %p208 = pneg %p60
        %p209 = pneg %p84
        %p210 = pneg %p81
        %p211 = pneg %p110
        %p212 = pneg %p107
        %s213 = sand.u32 %s97, 1
        %s214 = scalar_lea.sflag [#allocation4], %s213
        %s215 = sand.u32 %s97, 1
        %s216 = smul.addr %s215, 4
        %s217 = scalar_lea.vmem [#allocation8], %s216
        %v218 = vld [vmem:[%s187] sm:$0xf]
        %vm219 = vcmask 1043456
        %v220 = vsel %vm219, %v218, 0.0
        %v221 = vrot.slane %v220, 4
        %v222 = vadd.f32 %v220, %v221
        %v223 = vrot.slane %v222, 2
        %v224 = vadd.f32 %v222, %v223
        %v225 = vrot.slane %v224, 1
        %v226 = vadd.f32 %v224, %v225
        %v227 = vadd.f32 %v226, 0.0
        %s228 = sadd.s32 0, 4
        %s229 = scalar_lea.vmem %s187, %s228 [#allocation2]
        %v230 = vld [vmem:[%s229] sm:$0xf]
        %v231 = vsel %vm219, %v230, 0.0
        %v232 = vrot.slane %v231, 4
        %v233 = vadd.f32 %v231, %v232
        %v234 = vrot.slane %v233, 2
        %v235 = vadd.f32 %v233, %v234
        %v236 = vrot.slane %v235, 1
        %v237 = vadd.f32 %v235, %v236
        %v238 = vadd.f32 %v227, %v237
        %s239 = sadd.s32 0, 8
        %s240 = scalar_lea.vmem %s187, %s239 [#allocation2]
        %v241 = vld [vmem:[%s240] sm:$0xf]
        %v242 = vsel %vm219, %v241, 0.0
        %v243 = vrot.slane %v242, 4
        %v244 = vadd.f32 %v242, %v243
        %v245 = vrot.slane %v244, 2
        %v246 = vadd.f32 %v244, %v245
        %v247 = vrot.slane %v246, 1
        %v248 = vadd.f32 %v246, %v247
        %v249 = vadd.f32 %v238, %v248
        %251 = vrot.lane.b32.xlu0 %v249, 96
        %v252 = vpop.permute.xlu0 %251
        %v254 = vadd.f32 %v249, %v252
        %255 = vrot.lane.b32.xlu0 %v249, 64
        %v256 = vpop.permute.xlu0 %255
        %v258 = vadd.f32 %v254, %v256
        %259 = vrot.lane.b32.xlu0 %v249, 32
        %v260 = vpop.permute.xlu0 %259
        %v262 = vadd.f32 %v258, %v260
        %v263 = vld [vmem:[#allocation5] sm:$0xff]
        %v264 = vld [vmem:[#allocation5 + $0x8] sm:$0xff]
        %v265 = vld [vmem:[#allocation5 + $0x10] sm:$0xff]
        %v266 = vld [vmem:[#allocation5 + $0x18] sm:$0xff]
        %vm267 = vcmask 261120
        %v269 = vsel %vm267, %v262, 0
        %271 = vmatprep.subr.mxu0 0.0
        %272 = vmatpush1.msra.mxu0 0.0
        %273 = vmatprep.subr.mxu0 0.0
        %274 = vmatpush1.msra.mxu0 0.0
        %275 = vmatprep.subr.mxu0 0.0
        %276 = vmatpush1.msra.mxu0 0.0
        %277 = vmatprep.subr.mxu0 0.0
        %278 = vmatpush1.msra.mxu0 0.0
        %279 = vmatprep.subr.mxu0 0.0
        %280 = vmatpush1.msra.mxu0 0.0
        %281 = vmatprep.subr.mxu0 0.0
        %282 = vmatpush1.msra.mxu0 0.0
        %283 = vmatprep.subr.mxu0 0.0
        %284 = vmatpush1.msra.mxu0 0.0
        %285 = vmatprep.subr.mxu0 0.0
        %286 = vmatpush1.msra.mxu0 0.0
        %287 = vmatprep.subr.mxu0 0.0
        %288 = vmatpush1.msra.mxu0 0.0
        %289 = vmatprep.subr.mxu0 0.0
        %290 = vmatpush1.msra.mxu0 0.0
        %291 = vmatprep.subr.mxu0 0.0
        %292 = vmatpush1.msra.mxu0 0.0
        %293 = vmatprep.subr.mxu0 0.0
        %294 = vmatpush1.msra.mxu0 0.0
        %295 = vmatprep.subr.mxu0 0.0
        %296 = vmatpush1.msra.mxu0 %v266
        %297 = vmatprep.subr.mxu0 0.0
        %298 = vmatpush1.msra.mxu0 %v265
        %299 = vmatprep.subr.mxu0 0.0
        %300 = vmatpush1.msra.mxu0 %v264
        %301 = vmatprep.subr.mxu0 0.0
        %302 = vmatpush1.msra.mxu0 %v263
        %303 = vmatprep.subr.mxu0 0.0
        %304 = vmatpush2.msra.mxu0 0.0
        %305 = vmatprep.subr.mxu0 0.0
        %306 = vmatpush2.msra.mxu0 0.0
        %307 = vmatprep.subr.mxu0 0.0
        %308 = vmatpush2.msra.mxu0 0.0
        %309 = vmatprep.subr.mxu0 0.0
        %310 = vmatpush2.msra.mxu0 0.0
        %311 = vmatprep.subr.mxu0 0.0
        %312 = vmatpush2.msra.mxu0 0.0
        %313 = vmatprep.subr.mxu0 0.0
        %314 = vmatpush2.msra.mxu0 0.0
        %315 = vmatprep.subr.mxu0 0.0
        %316 = vmatpush2.msra.mxu0 0.0
        %317 = vmatprep.subr.mxu0 0.0
        %318 = vmatpush2.msra.mxu0 0.0
        %319 = vmatprep.subr.mxu0 0.0
        %320 = vmatpush2.msra.mxu0 0.0
        %321 = vmatprep.subr.mxu0 0.0
        %322 = vmatpush2.msra.mxu0 0.0
        %323 = vmatprep.subr.mxu0 0.0
        %324 = vmatpush2.msra.mxu0 0.0
        %325 = vmatprep.subr.mxu0 0.0
        %326 = vmatpush2.msra.mxu0 0.0
        %327 = vmatprep.subr.mxu0 0.0
        %328 = vmatpush2.msra.mxu0 0.0
        %329 = vmatprep.subr.mxu0 0.0
        %330 = vmatpush2.msra.mxu0 0.0
        %331 = vmatprep.subr.mxu0 0.0
        %332 = vmatpush2.msra.mxu0 0.0
        %333 = vmatprep.subr.mxu0 0.0
        %334 = vmatpush2.msra.mxu0 0.0
        %335 = vmatprep.mubr.f32.mxu0 0.0
        %336 = vmatmul.mubr.f32.gmra.mxu0 %v269
        %v337 = vpop.f32.mrf.mxu0
        %v338 = vadd.f32 0.0, %v337
        %v339 = vpop.f32.mrf.mxu0
        %340 = vdwg.mxu0
        %v341 = vmul.f32 %v338, 0.5
        %v342 = vmul.f32 %v338, 0.70710677
        %v343 = verf.f32.pop %v342
        %v344 = vadd.f32 %v343, 1.0
        %v345 = vmul.f32 %v341, %v344
        %v346 = vld [vmem:[#allocation7] sm:$0xff]
        %v347 = vld [vmem:[#allocation7 + $0x8] sm:$0xff]
        %v348 = vld [vmem:[#allocation7 + $0x10] sm:$0xff]
        %v349 = vld [vmem:[#allocation7 + $0x18] sm:$0xff]
        %v351 = vsel %vm267, %v345, 0
        %353 = vmatprep.subr.mxu0 0.0
        %354 = vmatpush1.msra.mxu0 0.0
        %355 = vmatprep.subr.mxu0 0.0
        %356 = vmatpush1.msra.mxu0 0.0
        %357 = vmatprep.subr.mxu0 0.0
        %358 = vmatpush1.msra.mxu0 0.0
        %359 = vmatprep.subr.mxu0 0.0
        %360 = vmatpush1.msra.mxu0 0.0
        %361 = vmatprep.subr.mxu0 0.0
        %362 = vmatpush1.msra.mxu0 0.0
        %363 = vmatprep.subr.mxu0 0.0
        %364 = vmatpush1.msra.mxu0 0.0
        %365 = vmatprep.subr.mxu0 0.0
        %366 = vmatpush1.msra.mxu0 0.0
        %367 = vmatprep.subr.mxu0 0.0
        %368 = vmatpush1.msra.mxu0 0.0
        %369 = vmatprep.subr.mxu0 0.0
        %370 = vmatpush1.msra.mxu0 0.0
        %371 = vmatprep.subr.mxu0 0.0
        %372 = vmatpush1.msra.mxu0 0.0
        %373 = vmatprep.subr.mxu0 0.0
        %374 = vmatpush1.msra.mxu0 0.0
        %375 = vmatprep.subr.mxu0 0.0
        %376 = vmatpush1.msra.mxu0 0.0
        %377 = vmatprep.subr.mxu0 0.0
        %378 = vmatpush1.msra.mxu0 %v349
        %379 = vmatprep.subr.mxu0 0.0
        %380 = vmatpush1.msra.mxu0 %v348
        %381 = vmatprep.subr.mxu0 0.0
        %382 = vmatpush1.msra.mxu0 %v347
        %383 = vmatprep.subr.mxu0 0.0
        %384 = vmatpush1.msra.mxu0 %v346
        %385 = vmatprep.subr.mxu0 0.0
        %386 = vmatpush2.msra.mxu0 0.0
        %387 = vmatprep.subr.mxu0 0.0
        %388 = vmatpush2.msra.mxu0 0.0
        %389 = vmatprep.subr.mxu0 0.0
        %390 = vmatpush2.msra.mxu0 0.0
        %391 = vmatprep.subr.mxu0 0.0
        %392 = vmatpush2.msra.mxu0 0.0
        %393 = vmatprep.subr.mxu0 0.0
        %394 = vmatpush2.msra.mxu0 0.0
        %395 = vmatprep.subr.mxu0 0.0
        %396 = vmatpush2.msra.mxu0 0.0
        %397 = vmatprep.subr.mxu0 0.0
        %398 = vmatpush2.msra.mxu0 0.0
        %399 = vmatprep.subr.mxu0 0.0
        %400 = vmatpush2.msra.mxu0 0.0
        %401 = vmatprep.subr.mxu0 0.0
        %402 = vmatpush2.msra.mxu0 0.0
        %403 = vmatprep.subr.mxu0 0.0
        %404 = vmatpush2.msra.mxu0 0.0
        %405 = vmatprep.subr.mxu0 0.0
        %406 = vmatpush2.msra.mxu0 0.0
        %407 = vmatprep.subr.mxu0 0.0
        %408 = vmatpush2.msra.mxu0 0.0
        %409 = vmatprep.subr.mxu0 0.0
        %410 = vmatpush2.msra.mxu0 0.0
        %411 = vmatprep.subr.mxu0 0.0
        %412 = vmatpush2.msra.mxu0 0.0
        %413 = vmatprep.subr.mxu0 0.0
        %414 = vmatpush2.msra.mxu0 0.0
        %415 = vmatprep.subr.mxu0 0.0
        %416 = vmatpush2.msra.mxu0 0.0
        %417 = vmatprep.mubr.f32.mxu0 0.0
        %418 = vmatmul.mubr.f32.gmra.mxu0 %v351
        %v419 = vpop.f32.mrf.mxu0
        %v420 = vadd.f32 0.0, %v419
        %v421 = vpop.f32.mrf.mxu0
        %422 = vdwg.mxu0
        %424 = vrot.lane.b32.xlu0 %v420, 96
        %v425 = vpop.permute.xlu0 %424
        %v427 = vmax.f32 %v420, %v425
        %428 = vrot.lane.b32.xlu0 %v420, 64
        %v429 = vpop.permute.xlu0 %428
        %v431 = vmax.f32 %v427, %v429
        %v432 = vsub.f32 %v420, %v431
        %v433 = vmul.f32 %v432, 1.442695
        %v434 = vpow.pop %v433
        %436 = vrot.lane.b32.xlu0 %v431, 32
        %v437 = vpop.permute.xlu0 %436
        %v439 = vsub.f32 %v420, %v437
        %v440 = vmul.f32 %v439, 1.442695
        %v441 = vpow.pop %v440
        %442 = vrot.lane.b32.xlu0 %v431, 64
        %v443 = vpop.permute.xlu0 %442
        %v445 = vsub.f32 %v420, %v443
        %v446 = vmul.f32 %v445, 1.442695
        %v447 = vpow.pop %v446
        %449 = vrot.lane.b32.xlu0 %v441, 96
        %v450 = vpop.permute.xlu0 %449
        %v452 = vadd.f32 %v434, %v450
        %454 = vrot.lane.b32.xlu0 %v447, 64
        %v455 = vpop.permute.xlu0 %454
        %v457 = vadd.f32 %v452, %v455
        %v458 = vrcp.pop %v457
        %v459 = vmul.f32 1.0, %v458
        %v460 = vmul.f32 %v434, %v459
        %462 = vrot.lane.b32.xlu0 %v460, 32
        %v463 = vpop.permute.xlu0 %462
        %465 = vrot.lane.b32.xlu0 %v460, 64
        %v466 = vpop.permute.xlu0 %465
        %468 = vrot.lane.b32.xlu0 %v460, 96
        %v469 = vpop.permute.xlu0 %468
        %v471 = vsel %vm267, %v460, %v463
        %vm472 = vcmask 523264
        %v473 = vsel %vm472, %v471, %v466
        %vm474 = vcmask 785408
        %v475 = vsel %vm474, %v473, %v469
        %477 = vrot.lane.b32.xlu0 %v459, 32
        %v478 = vpop.permute.xlu0 %477
        %v480 = vmul.f32 %v441, %v478
        %482 = vrot.lane.b32.xlu0 %v480, 96
        %v483 = vpop.permute.xlu0 %482
        %485 = vrot.lane.b32.xlu0 %v480, 32
        %v486 = vpop.permute.xlu0 %485
        %488 = vrot.lane.b32.xlu0 %v480, 64
        %v489 = vpop.permute.xlu0 %488
        %v491 = vsel %vm267, %v483, %v480
        %v492 = vsel %vm472, %v491, %v486
        %v493 = vsel %vm474, %v492, %v489
        %494 = vrot.lane.b32.xlu0 %v459, 64
        %v495 = vpop.permute.xlu0 %494
        %v497 = vmul.f32 %v447, %v495
        %499 = vrot.lane.b32.xlu0 %v497, 64
        %v500 = vpop.permute.xlu0 %499
        %502 = vrot.lane.b32.xlu0 %v497, 96
        %v503 = vpop.permute.xlu0 %502
        %505 = vrot.lane.b32.xlu0 %v497, 32
        %v506 = vpop.permute.xlu0 %505
        %v508 = vsel %vm267, %v500, %v503
        %v509 = vsel %vm472, %v508, %v497
        %v510 = vsel %vm474, %v509, %v506
        %v511 = vlaneseq
        %v512 = vshrl.u32 %v511, 7
        %v513 = vsub.s32 0, %v512
        %v514 = vrot.slane %v475, %v513
        %v515 = vmul.f32 %v514, %v218
        %v516 = vlaneseq
        %v517 = vshrl.u32 %v516, 7
        %v518 = vsub.s32 0, %v517
        %v519 = vrot.slane %v493, %v518
        %v520 = vmul.f32 %v519, %v230
        %v521 = vadd.f32 %v515, %v520
        %v522 = vlaneseq
        %v523 = vshrl.u32 %v522, 7
        %v524 = vsub.s32 0, %v523
        %v525 = vrot.slane %v510, %v524
        %v526 = vmul.f32 %v525, %v241
        %v527 = vadd.f32 %v521, %v526
        %528 = vst [vmem:[%s217] sm:$0xf] %v527
        %s529 = sand.u32 %s97, 1
        %s530 = scalar_lea.sflag [#allocation4], %s529
        %s531 = sand.u32 %s97, 1
        %s532 = smul.addr %s531, 4
        %s533 = scalar_lea.vmem [#allocation8], %s532
        // Predicated region
        $region45: #{tpu_custom_call.1} parent=31 // pred_check
          %p534 = pneg %p107
        $region46: #{tpu_custom_call.1} parent=31 // pred_check_branch
          %536 = sbr.rel (%p534) target = $region48
        $region47: #{tpu_custom_call.1} parent=31 // pred_region
          %s538 = ssub.s32 64, 64
          %539 = vsyncadd %s530, %s538
          %s540 = smul.addr %s21, 64
          %s541 = scalar_lea.hbm %s3, %s540
          %s543 = sshll.u32 %s533, 4
          %s544 = int_to_ptr.vmem [resolvable:$true] %s543
          %546 = dma.vmem_to_hbm [thread:$0]  %s544, 64, %s541, %s530
        $region48: #{tpu_custom_call.1} parent=31 // pred_fallthru
          _
      $region32: #{tpu_custom_call.1} parent=5 // pred_fallthru
        _
      %p547 = scmp.le.s32.totalorder 2, %s16
      // Predicated region
      $region49: #{tpu_custom_call.1} parent=5 // pred_check
        %p548 = pneg %p547
      $region50: #{tpu_custom_call.1} parent=5 // pred_check_branch
        %550 = sbr.rel (%p548) target = $region52
      $region51: #{tpu_custom_call.1} parent=5 // pred_region
        %s551 = ssub.s32 %s16, 2
        // Predicated region
        $region53: #{tpu_custom_call.1} parent=51 // pred_check
          %p552 = pneg %p113
        $region54: #{tpu_custom_call.1} parent=51 // pred_check_branch
          %554 = sbr.rel (%p552) target = $region56
        $region55: #{tpu_custom_call.1} parent=51 // pred_region
          %s555 = sand.u32 %s98, 1
          %s556 = scalar_lea.sflag [#allocation4], %s555
          %s557 = sand.u32 %s98, 1
          %s558 = smul.addr %s557, 4
          %s559 = scalar_lea.vmem [#allocation8], %s558
          %560 = dma.done %s556, 64
        $region56: #{tpu_custom_call.1} parent=51 // pred_fallthru
          _
      $region52: #{tpu_custom_call.1} parent=5 // pred_fallthru
        _
    $region6: #{tpu_custom_call.1} parent=1 // loop_footer
      %s20 = sadd.s32 1, %s16
    $region7: #{tpu_custom_call.1} parent=1 // loop_footer_branch
      %15 = sbr.rel target = $region3
    $region8: #{tpu_custom_call.1} parent=1 // loop_exit
      _
    %561 = vsyncpa [#allocation3], 1
    %s562 = scalar_lea.sflag [#allocation3], 1
    %563 = vsyncpa %s562, 1
    %564 = vsyncpa [#allocation6], 1
    %565 = vsyncpa [#allocation4], 1
    %s566 = scalar_lea.sflag [#allocation4], 1
    %567 = vsyncpa %s566, 1

</llo_original>
